<compile_context>
chip_gen: v5e
topology: v5e:2x2
jax: 0.10.0
libtpu: 0.0.40
codegen_flags: <defaults>
</compile_context>

<pallas_src>
import jax
import jax.numpy as jnp
import numpy as np
from jax.experimental import pallas as pl
from jax.experimental.pallas import tpu as pltpu


def _etoy_kernel(e_ref, mask_ref, w_ref, b_ref, out_ref):
    # One grid step == one batch tile of B elements.
    E = e_ref[...].astype(jnp.float32)          # (B, de, P)   P = n*n, lane axis
    mask = mask_ref[...]                        # (B, 1, P)    float32 pair mask

    # Valid-pair count (channel independent) -> one scalar per batch element.
    divide = jnp.sum(mask, axis=2)              # (B, 1)
    inv = pl.reciprocal(divide, approx=False)   # (B, 1)  exact; cost is negligible

    valid = mask > 0.0                          # (B, 1, P) -> broadcasts over de

    # --- single fused pass over the E block (all reductions over lanes) -----
    s = jnp.sum(E, axis=2)                      # (B, de)  UNMASKED sum (matches ref)
    Em = jnp.where(valid, E, 0.0)               # masked E (mask is binary)
    sm = jnp.sum(Em, axis=2)                    # (B, de)  sum(E * mask)
    sq = jnp.sum(Em * Em, axis=2)               # (B, de)  sum(E^2 * mask)
    # Sentinel-select masked min/max (== reference's +/-1e5*imask for |E| << 1e5).
    mi = jnp.min(jnp.where(valid, E, 1.0e5), axis=2)    # (B, de)
    ma = jnp.max(jnp.where(valid, E, -1.0e5), axis=2)   # (B, de)

    m = s * inv                                 # (B, de)  mean
    # sum((E - m)^2 * mask)/divide = (sq - 2*m*sm)/divide + m^2 (one-pass form;
    # "std" name kept to match the reference, which does not take a sqrt).
    std = (sq - 2.0 * m * sm) * inv + m * m     # (B, de)

    # --- linear: z = hstack((m, mi, ma, std)); out = z @ W + b --------------
    # Four batched partial matmuls on sublane-aligned weight slices (avoids an
    # unaligned lane-axis concat; MXU cost is negligible either way).
    de = E.shape[1]
    w = w_ref[...]                              # (4*de, dy)
    acc = b_ref[...].astype(jnp.float32)        # (1, dy) -> broadcasts to (B, dy)
    for i, part in enumerate((m, mi, ma, std)):
        acc = acc + jnp.dot(part, w[i * de:(i + 1) * de, :],
                            preferred_element_type=jnp.float32)
    out_ref[...] = acc[:, None, :].astype(out_ref.dtype)   # (B, 1, dy)


def _vmem_budget_bytes():
    """~70% of the chip's physical VMEM: ~45 MiB on v7x (64 MiB physical),
    ~90 MiB on v5e/v6e (128 MiB), leaving headroom for weights/bias/output
    blocks and Mosaic internal scratch."""
    cap = 64 * 1024 * 1024                      # v7x-sized fallback (smallest gen)
    try:
        info = pltpu.get_tpu_info()
        cap = int(getattr(info, "vmem_capacity_bytes", cap))
    except Exception:
        pass
    return int(cap * 0.7)


def _pick_batch_tile(bs, de, P, e_itemsize, vmem_budget):
    """Largest batch tile B that (a) divides bs, (b) fits the VMEM budget when
    accounting for lane/sublane padding and live f32 intermediates, and
    (c) leaves >= 2 grid steps when bs >= 2 so the single 'parallel' grid axis
    can be sharded across v7x's two TensorCores."""
    de_pad = -(-de // 8) * 8
    p_pad = -(-P // 128) * 128
    per_elem = (2 * de_pad * p_pad * e_itemsize   # double-buffered E input block
                + 3 * de_pad * p_pad * 4          # live f32 intermediates (E, Em, selects)
                + 2 * p_pad * 4)                  # double-buffered mask block
    cap = max(1, vmem_budget // per_elem)

    divisors = [d for d in range(1, bs + 1) if bs % d == 0]
    fitting = [d for d in divisors if d <= cap]
    if not fitting:
        # TODO(synk): pad bs host-side for batches whose single element overflows
        # the budget estimate; per-element steps are the safe fallback.
        return 1
    two_step = [d for d in fitting if bs // d >= 2]
    return max(two_step) if two_step else max(fitting)


def etoy_forward(E, e_mask1, e_mask2, w, b):
    """E: (bs, n, n, de); e_mask1: (bs, n, 1, 1); e_mask2: (bs, 1, n, 1);
    w: (4*de, dy) (transpose of torch's (dy, 4*de)); b: (dy,). Returns (bs, dy)."""
    bs, n, _, de = E.shape
    dy = w.shape[1]
    P = n * n

    # Lane-dense layout: channels on sublanes, the n*n pair axis on lanes.
    # One extra XLA pass over E in HBM; removes the ~128/de x lane padding the
    # kernel would otherwise pay in VMEM/VPU on every element.
    Et = jnp.transpose(E, (0, 3, 1, 2)).reshape(bs, de, P)
    pair_mask = (e_mask1 * e_mask2).astype(jnp.float32).reshape(bs, 1, P)
    b2 = b.reshape(1, dy)

    budget = _vmem_budget_bytes()
    B = _pick_batch_tile(bs, de, P, Et.dtype.itemsize, budget)
    grid = (bs // B,)

    out = pl.pallas_call(
        _etoy_kernel,
        out_shape=jax.ShapeDtypeStruct((bs, 1, dy), E.dtype),
        grid=grid,
        in_specs=[
            pl.BlockSpec((B, de, P), lambda i: (i, 0, 0)),
            pl.BlockSpec((B, 1, P), lambda i: (i, 0, 0)),
            pl.BlockSpec((4 * de, dy), lambda i: (0, 0)),
            pl.BlockSpec((1, dy), lambda i: (0, 0)),
        ],
        out_specs=pl.BlockSpec((B, 1, dy), lambda i: (i, 0, 0)),
        compiler_params=pltpu.CompilerParams(
            dimension_semantics=("parallel",),
            vmem_limit_bytes=budget),
    )(Et, pair_mask, w, b2)
    return out.reshape(bs, dy)


def etoy_reference(E, e_mask1, e_mask2, w, b):
    """Pure-JAX reference mirroring the PyTorch forward exactly."""
    mask = jnp.broadcast_to(e_mask1 * e_mask2, E.shape)
    imask = 1.0 - mask
    divide = jnp.sum(mask, axis=(1, 2))
    m = jnp.sum(E, axis=(1, 2)) / divide
    mi = jnp.min(E + 100000.0 * imask, axis=(1, 2))
    ma = jnp.max(E - 100000.0 * imask, axis=(1, 2))
    std = jnp.sum((E - m[:, None, None, :]) ** 2 * mask, axis=(1, 2)) / divide
    z = jnp.concatenate([m, mi, ma, std], axis=1)
    return z @ w + b


if __name__ == "__main__":
    bs, n, de, dy = 2, 8, 8, 16

    key = jax.random.PRNGKey(0)
    k_e, k_w, k_b = jax.random.split(key, 3)

    E = jax.random.normal(k_e, (bs, n, n, de), dtype=jnp.float32)

    # Node masks (at least one valid node per batch element).
    node_mask = jnp.array(
        [[1, 1, 1, 1, 1, 0, 0, 0],
         [1, 1, 1, 1, 1, 1, 1, 1]], dtype=jnp.float32)
    e_mask1 = node_mask[:, :, None, None]   # (bs, n, 1, 1)
    e_mask2 = node_mask[:, None, :, None]   # (bs, 1, n, 1)

    # Deterministic nn.Linear(4*de, dy)-style init (uniform in +-1/sqrt(fan_in)).
    bound = 1.0 / np.sqrt(4 * de)
    w = jax.random.uniform(k_w, (4 * de, dy), jnp.float32, -bound, bound)
    b = jax.random.uniform(k_b, (dy,), jnp.float32, -bound, bound)

    out = etoy_forward(E, e_mask1, e_mask2, w, b)
    out = jax.block_until_ready(out)

    ref = etoy_reference(E, e_mask1, e_mask2, w, b)
    if not np.allclose(np.asarray(out), np.asarray(ref), rtol=1e-4, atol=1e-4):
        raise AssertionError("Pallas kernel output mismatch vs reference")

    print("KERNEL_OK")
</pallas_src>

<mosaic_0001>
module attributes {stable_mosaic.version = 11 : i64} {
  func.func @_etoy_kernel(%arg0: i32, %arg1: memref<1x8x64xf32, #tpu.memory_space<vmem>>, %arg2: memref<1x1x64xf32, #tpu.memory_space<vmem>>, %arg3: memref<32x16xf32, #tpu.memory_space<vmem>>, %arg4: memref<1x16xf32, #tpu.memory_space<vmem>>, %arg5: memref<1x1x16xf32, #tpu.memory_space<vmem>>) attributes {dimension_semantics = [#tpu.dimension_semantics<parallel>], iteration_bounds = array<i64: 2>, scalar_prefetch = 0 : i64, scratch_operands = 0 : i64, tpu.core_type = #tpu.core_type<tc>, window_params = [{transform_indices = @transform_0, window_bounds = array<i64: 1, 8, 64>}, {transform_indices = @transform_1, window_bounds = array<i64: 1, 1, 64>}, {pipeline_mode = #tpu.pipeline_mode<synchronous>, transform_indices = @transform_2, window_bounds = array<i64: 32, 16>}, {pipeline_mode = #tpu.pipeline_mode<synchronous>, transform_indices = @transform_3, window_bounds = array<i64: 1, 16>}, {transform_indices = @transform_4, window_bounds = array<i64: 1, 1, 16>}]} {
    %c0 = arith.constant 0 : index
    %c0_0 = arith.constant 0 : index
    %c0_1 = arith.constant 0 : index
    %0 = vector.load %arg1[%c0, %c0_0, %c0_1] : memref<1x8x64xf32, #tpu.memory_space<vmem>>, vector<1x8x64xf32>
    %c0_2 = arith.constant 0 : index
    %c0_3 = arith.constant 0 : index
    %c0_4 = arith.constant 0 : index
    %1 = vector.load %arg2[%c0_2, %c0_3, %c0_4] : memref<1x1x64xf32, #tpu.memory_space<vmem>>, vector<1x1x64xf32>
    %cst = arith.constant dense<0.000000e+00> : vector<1x1xf32>
    %2 = vector.multi_reduction <add>, %1, %cst [2] : vector<1x1x64xf32> to vector<1x1xf32>
    %3 = tpu.reciprocal %2 : vector<1x1xf32> -> vector<1x1xf32>
    %cst_5 = arith.constant 0.000000e+00 : f32
    %4 = vector.broadcast %cst_5 : f32 to vector<1x1x64xf32>
    %5 = arith.cmpf ogt, %1, %4 : vector<1x1x64xf32>
    %cst_6 = arith.constant dense<0.000000e+00> : vector<1x8xf32>
    %6 = vector.multi_reduction <add>, %0, %cst_6 [2] : vector<1x8x64xf32> to vector<1x8xf32>
    %cst_7 = arith.constant 0.000000e+00 : f32
    %7 = vector.shape_cast %5 : vector<1x1x64xi1> to vector<1x1x64xi1>
    %8 = vector.broadcast %7 : vector<1x1x64xi1> to vector<1x8x64xi1>
    %9 = vector.broadcast %cst_7 : f32 to vector<1x8x64xf32>
    %10 = arith.select %8, %0, %9 : vector<1x8x64xi1>, vector<1x8x64xf32>
    %cst_8 = arith.constant dense<0.000000e+00> : vector<1x8xf32>
    %11 = vector.multi_reduction <add>, %10, %cst_8 [2] : vector<1x8x64xf32> to vector<1x8xf32>
    %12 = arith.mulf %10, %10 : vector<1x8x64xf32>
    %cst_9 = arith.constant dense<0.000000e+00> : vector<1x8xf32>
    %13 = vector.multi_reduction <add>, %12, %cst_9 [2] : vector<1x8x64xf32> to vector<1x8xf32>
    %cst_10 = arith.constant 1.000000e+05 : f32
    %14 = vector.shape_cast %5 : vector<1x1x64xi1> to vector<1x1x64xi1>
    %15 = vector.broadcast %14 : vector<1x1x64xi1> to vector<1x8x64xi1>
    %16 = vector.broadcast %cst_10 : f32 to vector<1x8x64xf32>
    %17 = arith.select %15, %0, %16 : vector<1x8x64xi1>, vector<1x8x64xf32>
    %cst_11 = arith.constant dense<0x7F800000> : vector<1x8xf32>
    %18 = vector.multi_reduction <minimumf>, %17, %cst_11 [2] : vector<1x8x64xf32> to vector<1x8xf32>
    %cst_12 = arith.constant -1.000000e+05 : f32
    %19 = vector.shape_cast %5 : vector<1x1x64xi1> to vector<1x1x64xi1>
    %20 = vector.broadcast %19 : vector<1x1x64xi1> to vector<1x8x64xi1>
    %21 = vector.broadcast %cst_12 : f32 to vector<1x8x64xf32>
    %22 = arith.select %20, %0, %21 : vector<1x8x64xi1>, vector<1x8x64xf32>
    %cst_13 = arith.constant dense<0xFF800000> : vector<1x8xf32>
    %23 = vector.multi_reduction <maximumf>, %22, %cst_13 [2] : vector<1x8x64xf32> to vector<1x8xf32>
    %24 = vector.broadcast %3 : vector<1x1xf32> to vector<1x8xf32>
    %25 = arith.mulf %6, %24 : vector<1x8xf32>
    %cst_14 = arith.constant 2.000000e+00 : f32
    %26 = vector.broadcast %cst_14 : f32 to vector<1x8xf32>
    %27 = arith.mulf %26, %25 : vector<1x8xf32>
    %28 = arith.mulf %27, %11 : vector<1x8xf32>
    %29 = arith.subf %13, %28 : vector<1x8xf32>
    %30 = vector.broadcast %3 : vector<1x1xf32> to vector<1x8xf32>
    %31 = arith.mulf %29, %30 : vector<1x8xf32>
    %32 = arith.mulf %25, %25 : vector<1x8xf32>
    %33 = arith.addf %31, %32 : vector<1x8xf32>
    %c0_15 = arith.constant 0 : index
    %c0_16 = arith.constant 0 : index
    %34 = vector.load %arg3[%c0_15, %c0_16] : memref<32x16xf32, #tpu.memory_space<vmem>>, vector<32x16xf32>
    %c0_17 = arith.constant 0 : index
    %c0_18 = arith.constant 0 : index
    %35 = vector.load %arg4[%c0_17, %c0_18] : memref<1x16xf32, #tpu.memory_space<vmem>>, vector<1x16xf32>
    %36 = vector.extract_strided_slice %34 {offsets = [0, 0], sizes = [8, 16], strides = [1, 1]} : vector<32x16xf32> to vector<8x16xf32>
    %cst_19 = arith.constant dense<0.000000e+00> : vector<1x16xf32>
    %37 = tpu.matmul %25, %36, %cst_19 {dimension_numbers = #tpu.dot_dimension_numbers<[1], [0], [0], [1], [0, 0, 1, 1], [], []>} : vector<1x8xf32>, vector<8x16xf32>, vector<1x16xf32> -> vector<1x16xf32>
    %38 = arith.addf %35, %37 : vector<1x16xf32>
    %39 = vector.extract_strided_slice %34 {offsets = [8, 0], sizes = [8, 16], strides = [1, 1]} : vector<32x16xf32> to vector<8x16xf32>
    %cst_20 = arith.constant dense<0.000000e+00> : vector<1x16xf32>
    %40 = tpu.matmul %18, %39, %cst_20 {dimension_numbers = #tpu.dot_dimension_numbers<[1], [0], [0], [1], [0, 0, 1, 1], [], []>} : vector<1x8xf32>, vector<8x16xf32>, vector<1x16xf32> -> vector<1x16xf32>
    %41 = arith.addf %38, %40 : vector<1x16xf32>
    %42 = vector.extract_strided_slice %34 {offsets = [16, 0], sizes = [8, 16], strides = [1, 1]} : vector<32x16xf32> to vector<8x16xf32>
    %cst_21 = arith.constant dense<0.000000e+00> : vector<1x16xf32>
    %43 = tpu.matmul %23, %42, %cst_21 {dimension_numbers = #tpu.dot_dimension_numbers<[1], [0], [0], [1], [0, 0, 1, 1], [], []>} : vector<1x8xf32>, vector<8x16xf32>, vector<1x16xf32> -> vector<1x16xf32>
    %44 = arith.addf %41, %43 : vector<1x16xf32>
    %45 = vector.extract_strided_slice %34 {offsets = [24, 0], sizes = [8, 16], strides = [1, 1]} : vector<32x16xf32> to vector<8x16xf32>
    %cst_22 = arith.constant dense<0.000000e+00> : vector<1x16xf32>
    %46 = tpu.matmul %33, %45, %cst_22 {dimension_numbers = #tpu.dot_dimension_numbers<[1], [0], [0], [1], [0, 0, 1, 1], [], []>} : vector<1x8xf32>, vector<8x16xf32>, vector<1x16xf32> -> vector<1x16xf32>
    %47 = arith.addf %44, %46 : vector<1x16xf32>
    %48 = vector.shape_cast %47 : vector<1x16xf32> to vector<1x1x16xf32>
    %c0_23 = arith.constant 0 : index
    %c0_24 = arith.constant 0 : index
    %c0_25 = arith.constant 0 : index
    %49 = vector.load %arg5[%c0_23, %c0_24, %c0_25] : memref<1x1x16xf32, #tpu.memory_space<vmem>>, vector<1x1x16xf32>
    tpu.vector_store %arg5[%c0_23, %c0_24, %c0_25], %48 {strides = array<i32>} : memref<1x1x16xf32, #tpu.memory_space<vmem>>, vector<1x1x16xf32>,
    return
  }
  func.func @transform_0(%arg0: i32) -> (i32, i32, i32) {
    %c0_i32 = arith.constant 0 : i32
    %c0_i32_0 = arith.constant 0 : i32
    %c0_i32_1 = arith.constant 0 : i32
    return %arg0, %c0_i32, %c0_i32_0 : i32, i32, i32
  }
  func.func @transform_1(%arg0: i32) -> (i32, i32, i32) {
    %c0_i32 = arith.constant 0 : i32
    %c0_i32_0 = arith.constant 0 : i32
    %c0_i32_1 = arith.constant 0 : i32
    return %arg0, %c0_i32, %c0_i32_0 : i32, i32, i32
  }
  func.func @transform_2(%arg0: i32) -> (i32, i32) {
    %c0_i32 = arith.constant 0 : i32
    %c0_i32_0 = arith.constant 0 : i32
    %c0_i32_1 = arith.constant 0 : i32
    return %c0_i32, %c0_i32_0 : i32, i32
  }
  func.func @transform_3(%arg0: i32) -> (i32, i32) {
    %c0_i32 = arith.constant 0 : i32
    %c0_i32_0 = arith.constant 0 : i32
    %c0_i32_1 = arith.constant 0 : i32
    return %c0_i32, %c0_i32_0 : i32, i32
  }
  func.func @transform_4(%arg0: i32) -> (i32, i32, i32) {
    %c0_i32 = arith.constant 0 : i32
    %c0_i32_0 = arith.constant 0 : i32
    %c0_i32_1 = arith.constant 0 : i32
    return %arg0, %c0_i32, %c0_i32_0 : i32, i32, i32
  }
}

</mosaic_0001>

<llo_original>
// kernel: tpu_custom_call.1
$region0: #{tpu_custom_call.1}
  #allocation0 [shape = 'u32[]', space=smem, size = 0x4, offset = 0x4, fixed_abs, tag = 'smem constant byte address 0x4 - core index']
  #allocation1 [shape = 'u32[72,128]{1,0:T(1,128)}', space=vmem, size = 0x9000, scoped, tag = 'internal scratch']
  %s0 = inlined_call_operand.vmem [shape: f32[2,8,64], index: 0, kind: input, shape index: {}]
  %s1 = inlined_call_operand.vmem [shape: f32[2,1,64], index: 1, kind: input, shape index: {}]
  %s2 = inlined_call_operand.vmem [shape: f32[32,16], index: 2, kind: input, shape index: {}]
  %s3 = inlined_call_operand.vmem [shape: f32[1,16], index: 3, kind: input, shape index: {}]
  %s4 = inlined_call_operand.hbm [shape: f32[2,1,16], index: 4, kind: output, shape index: {}]
  %s5 = sld [smem:[#allocation0]]
  $region49: #{tpu_custom_call.1} parent=0
    _
  %s7 = ssub.s32 1, %s5
  %s8 = scalar_select 0, %s7, %s5
  $region1: #{tpu_custom_call.1} parent=0
    #allocation2 [shape = 'u8[1024]{0}', space=vmem, size = 0x400, scoped, tag = 'output window, operand 0']
    #allocation3 [shape = 's32[2]{0}', space=sflag, size = 0x8, scoped, tag = 'scoped memory for tpu_custom_call.1']
    %9 = vsyncpa [#allocation3], 0
    %s10 = scalar_lea.sflag [#allocation3], 1
    %11 = vsyncpa %s10, 0
    loop: start=0, step=1, limit=4
    $region2: #{tpu_custom_call.1} parent=1 // loop_pre_header
      _
    $region3: #{tpu_custom_call.1} parent=1 // loop_header
      %s13 = sphi 0, %s17
      %p14 = scmp.ge.s32.totalorder %s13, 4
      %s23 = sphi 0, %s25
      %s26 = sphi 0, %s23
      %s27 = sphi 0, %s26
      %s43 = sphi 0, %s27
      %s49 = sphi 0, %s51
      %s52 = sphi 0, %s49
      %s53 = sphi 0, %s52
      %s69 = sphi 0, %s53
      %s73 = sphi 0, %s73
      %s75 = sphi 0, %s73
      %s76 = sphi 0, %s75
      %s90 = sphi 0, %s76
      %s94 = sphi 0, %s94
      %s96 = sphi 0, %s94
      %s97 = sphi 0, %s96
      %s111 = sphi 0, %s97
      %s117 = sphi 0, %s119
      %s120 = sphi 0, %s117
      %s121 = sphi 0, %s120
      %s137 = sphi 0, %s121
    $region4: #{tpu_custom_call.1} parent=1 // loop_header_branch
      %16 = sbr.rel (%p14) target = $region8
    $region5: #{tpu_custom_call.1} parent=1 // loop_body
      %s18 = ssub.s32 %s13, 1
      %s19 = ssub.s32 %s13, 2
      %s20 = sadd.s32 %s13, 1
      %s21 = ssub.s32 %s13, %s20
      %p22 = scmp.eq.s32.totalorder %s21, 0
      %s24 = sadd.s32 %s23, 1
      %s25 = scalar_select %p22, %s23, %s24
      %p28 = pneg %p22
      %p29 = scmp.eq.s32.totalorder %s13, 1
      %p30 = por %p28, %p29
      %p31 = scmp.ne.s32.totalorder %s23, %s26
      %p32 = scmp.eq.s32.totalorder %s13, 0
      %p33 = por %p31, %p32
      %p34 = scmp.ne.s32.totalorder %s23, %s26
      %p35 = scmp.eq.s32.totalorder %s18, 1
      %p36 = por %p34, %p35
      %p37 = scmp.ne.s32.totalorder %s26, %s27
      %p38 = scmp.eq.s32.totalorder %s18, 0
      %p39 = por %p37, %p38
      %p40 = scmp.ne.s32.totalorder %s26, %s27
      %p41 = scmp.eq.s32.totalorder %s19, 1
      %p42 = por %p40, %p41
      %p44 = scmp.ne.s32.totalorder %s27, %s43
      %p45 = scmp.eq.s32.totalorder %s19, 0
      %p46 = por %p44, %p45
      %s47 = ssub.s32 %s13, %s20
      %p48 = scmp.eq.s32.totalorder %s47, 0
      %s50 = sadd.s32 %s49, 1
      %s51 = scalar_select %p48, %s49, %s50
      %p54 = pneg %p48
      %p55 = scmp.eq.s32.totalorder %s13, 1
      %p56 = por %p54, %p55
      %p57 = scmp.ne.s32.totalorder %s49, %s52
      %p58 = scmp.eq.s32.totalorder %s13, 0
      %p59 = por %p57, %p58
      %p60 = scmp.ne.s32.totalorder %s49, %s52
      %p61 = scmp.eq.s32.totalorder %s18, 1
      %p62 = por %p60, %p61
      %p63 = scmp.ne.s32.totalorder %s52, %s53
      %p64 = scmp.eq.s32.totalorder %s18, 0
      %p65 = por %p63, %p64
      %p66 = scmp.ne.s32.totalorder %s52, %s53
      %p67 = scmp.eq.s32.totalorder %s19, 1
      %p68 = por %p66, %p67
      %p70 = scmp.ne.s32.totalorder %s53, %s69
      %p71 = scmp.eq.s32.totalorder %s19, 0
      %p72 = por %p70, %p71
      %s74 = sadd.s32 %s73, 1
      %p77 = scmp.eq.s32.totalorder %s13, 1
      %p78 = scmp.ne.s32.totalorder %s73, %s75
      %p79 = scmp.eq.s32.totalorder %s13, 0
      %p80 = por %p78, %p79
      %p81 = scmp.ne.s32.totalorder %s73, %s75
      %p82 = scmp.eq.s32.totalorder %s18, 1
      %p83 = por %p81, %p82
      %p84 = scmp.ne.s32.totalorder %s75, %s76
      %p85 = scmp.eq.s32.totalorder %s18, 0
      %p86 = por %p84, %p85
      %p87 = scmp.ne.s32.totalorder %s75, %s76
      %p88 = scmp.eq.s32.totalorder %s19, 1
      %p89 = por %p87, %p88
      %p91 = scmp.ne.s32.totalorder %s76, %s90
      %p92 = scmp.eq.s32.totalorder %s19, 0
      %p93 = por %p91, %p92
      %s95 = sadd.s32 %s94, 1
      %p98 = scmp.eq.s32.totalorder %s13, 1
      %p99 = scmp.ne.s32.totalorder %s94, %s96
      %p100 = scmp.eq.s32.totalorder %s13, 0
      %p101 = por %p99, %p100
      %p102 = scmp.ne.s32.totalorder %s94, %s96
      %p103 = scmp.eq.s32.totalorder %s18, 1
      %p104 = por %p102, %p103
      %p105 = scmp.ne.s32.totalorder %s96, %s97
      %p106 = scmp.eq.s32.totalorder %s18, 0
      %p107 = por %p105, %p106
      %p108 = scmp.ne.s32.totalorder %s96, %s97
      %p109 = scmp.eq.s32.totalorder %s19, 1
      %p110 = por %p108, %p109
      %p112 = scmp.ne.s32.totalorder %s97, %s111
      %p113 = scmp.eq.s32.totalorder %s19, 0
      %p114 = por %p112, %p113
      %s115 = ssub.s32 %s13, %s20
      %p116 = scmp.eq.s32.totalorder %s115, 0
      %s118 = sadd.s32 %s117, 1
      %s119 = scalar_select %p116, %s117, %s118
      %p122 = pneg %p116
      %p123 = scmp.eq.s32.totalorder %s13, 1
      %p124 = por %p122, %p123
      %p125 = scmp.ne.s32.totalorder %s117, %s120
      %p126 = scmp.eq.s32.totalorder %s13, 0
      %p127 = por %p125, %p126
      %p128 = scmp.ne.s32.totalorder %s117, %s120
      %p129 = scmp.eq.s32.totalorder %s18, 1
      %p130 = por %p128, %p129
      %p131 = scmp.ne.s32.totalorder %s120, %s121
      %p132 = scmp.eq.s32.totalorder %s18, 0
      %p133 = por %p131, %p132
      %p134 = scmp.ne.s32.totalorder %s120, %s121
      %p135 = scmp.eq.s32.totalorder %s19, 1
      %p136 = por %p134, %p135
      %p138 = scmp.ne.s32.totalorder %s121, %s137
      %p139 = scmp.eq.s32.totalorder %s19, 0
      %p140 = por %p138, %p139
      %p141 = scmp.le.s32.totalorder 1, %s13
      %p142 = scmp.lt.s32.totalorder %s13, 3
      %p143 = pnand %p141, %p142
      %p144 = pneg %p143
      // Predicated region
      $region9: #{tpu_custom_call.1} parent=5 // pred_check
        _
      $region10: #{tpu_custom_call.1} parent=5 // pred_check_branch
        %146 = sbr.rel (%p143) target = $region12
      $region11: #{tpu_custom_call.1} parent=5 // pred_region
        %s147 = ssub.s32 %s13, 1
        // Predicated region
        $region13: #{tpu_custom_call.1} parent=11 // pred_check
          %p148 = pneg %p86
        $region14: #{tpu_custom_call.1} parent=11 // pred_check_branch
          %150 = sbr.rel (%p148) target = $region16
        $region15: #{tpu_custom_call.1} parent=11 // pred_region
          _
        $region16: #{tpu_custom_call.1} parent=11 // pred_fallthru
          _
        // Predicated region
        $region17: #{tpu_custom_call.1} parent=11 // pred_check
          %p151 = pneg %p107
        $region18: #{tpu_custom_call.1} parent=11 // pred_check_branch
          %153 = sbr.rel (%p151) target = $region20
        $region19: #{tpu_custom_call.1} parent=11 // pred_region
          _
        $region20: #{tpu_custom_call.1} parent=11 // pred_fallthru
          _
      $region12: #{tpu_custom_call.1} parent=5 // pred_fallthru
        _
      %p154 = scmp.lt.s32.totalorder %s13, 2
      // Predicated region
      $region21: #{tpu_custom_call.1} parent=5 // pred_check
        %p155 = pneg %p154
      $region22: #{tpu_custom_call.1} parent=5 // pred_check_branch
        %157 = sbr.rel (%p155) target = $region24
      $region23: #{tpu_custom_call.1} parent=5 // pred_region
        // Predicated region
        $region25: #{tpu_custom_call.1} parent=23 // pred_check
          %p158 = pneg %p33
        $region26: #{tpu_custom_call.1} parent=23 // pred_check_branch
          %160 = sbr.rel (%p158) target = $region28
        $region27: #{tpu_custom_call.1} parent=23 // pred_region
          %p161 = scmp.lt.s32.totalorder %s13, 1
          %s162 = scalar_select %p161, %s13, 1
          %s163 = smul.addr %s162, 8
          %s164 = scalar_lea.vmem %s0, %s163
        $region28: #{tpu_custom_call.1} parent=23 // pred_fallthru
          _
        // Predicated region
        $region29: #{tpu_custom_call.1} parent=23 // pred_check
          %p165 = pneg %p59
        $region30: #{tpu_custom_call.1} parent=23 // pred_check_branch
          %167 = sbr.rel (%p165) target = $region32
        $region31: #{tpu_custom_call.1} parent=23 // pred_region
          %p168 = scmp.lt.s32.totalorder %s13, 1
          %s169 = scalar_select %p168, %s13, 1
          %s170 = scalar_lea.vmem %s1, %s169
        $region32: #{tpu_custom_call.1} parent=23 // pred_fallthru
          _
      $region24: #{tpu_custom_call.1} parent=5 // pred_fallthru
        _
      %p171 = scmp.le.s32.totalorder 1, %s13
      %p172 = scmp.lt.s32.totalorder %s13, 3
      %p173 = pnand %p171, %p172
      %p174 = pneg %p173
      // Predicated region
      $region33: #{tpu_custom_call.1} parent=5 // pred_check
        _
      $region34: #{tpu_custom_call.1} parent=5 // pred_check_branch
        %176 = sbr.rel (%p173) target = $region36
      $region35: #{tpu_custom_call.1} parent=5 // pred_region
        %s177 = ssub.s32 %s13, 1
        %p178 = scmp.lt.s32.totalorder %s18, 1
        %s179 = scalar_select %p178, %s18, 1
        %s180 = smul.addr %s179, 8
        %s181 = scalar_lea.vmem %s0, %s180
        %p182 = pneg %p39
        %p183 = pneg %p36
        %p184 = scmp.lt.s32.totalorder %s18, 1
        %s185 = scalar_select %p184, %s18, 1
        %s186 = scalar_lea.vmem %s1, %s185
        %p187 = pneg %p65
        %p188 = pneg %p62
        %p189 = pneg %p86
        %p190 = pneg %p83
        %p191 = pneg %p107
        %p192 = pneg %p104
        %p193 = pneg %p133
        %p194 = pneg %p130
        %s195 = sand.u32 %s120, 1
        %s196 = scalar_lea.sflag [#allocation3], %s195
        %s197 = sand.u32 %s120, 1
        %s198 = scalar_lea.vmem [#allocation2], %s197
        %p199 = scmp.lt.s32.totalorder %s18, 1
        %s200 = scalar_select %p199, %s18, 1
        %s201 = smul.addr %s200, 8
        %s202 = scalar_lea.vmem %s0, %s201
        %p203 = scmp.lt.s32.totalorder %s18, 1
        %s204 = scalar_select %p203, %s18, 1
        %s205 = scalar_lea.vmem %s1, %s204
        %v206 = vld [vmem:[%s202] sm:$0xff]
        %v207 = vld [vmem:[%s205] sm:$0x1]
        %vm208 = vcmask 516096
        %v209 = vsel %vm208, %v207, 0.0
        %210 = vadd.xlane.f32.xlu0 %v209
        %v211 = vpop.xlane.xlu0 %210
        %v212 = vrcp.pop %v211
        %v213 = vmul.f32 %v211, %v212
        %v214 = vsub.f32 1.0, %v213
        %v215 = vmul.f32 %v212, %v214
        %v216 = vadd.f32 %v212, %v215
        %vm217 = vweird.f32 %v211
        %vm218 = vweird.f32 %v212
        %vm219 = vmor %vm217, %vm218
        %v220 = vsel %vm219, %v212, %v216
        %v221 = vand.u32 2147483647, %v211
        %vm222 = vcmp.eq.f32.partialorder %v221, 8.507059e+37
        %v223 = vand.u32 %v211, 2147483648
        %v224 = vor.u32 1.1754944e-38, %v223
        %v225 = vsel %vm222, %v224, %v220
        %vm226 = vcmp.gt.f32.partialorder %v207, 0.0
        %vm227 = vcmask 523264
        %v228 = vsel %vm227, %v206, 0.0
        %229 = vadd.xlane.f32.xlu0 %v228
        %v230 = vpop.xlane.xlu0 %229
        %v231 = vsel %vm226, 1, 0
        %v232 = vperm.slane %v231, 0
        %vm233 = vcmp.eq.s32.totalorder %v232, 1
        %v234 = vsel %vm233, %v206, 0.0
        %v235 = vsel %vm227, %v234, 0.0
        %236 = vadd.xlane.f32.xlu0 %v235
        %v237 = vpop.xlane.xlu0 %236
        %v238 = vmul.f32 %v234, %v234
        %v239 = vsel %vm227, %v238, 0.0
        %240 = vadd.xlane.f32.xlu0 %v239
        %v241 = vpop.xlane.xlu0 %240
        %v242 = vsel %vm233, %v206, 100000.0
        %v243 = vsel %vm227, %v242, inf
        %244 = vmin.xlane.f32.xlu0 %v243
        %v245 = vpop.xlane.xlu0 %244
        %v246 = vsel %vm233, %v206, -100000.0
        %v247 = vsel %vm227, %v246, -inf
        %248 = vmax.xlane.f32.xlu0 %v247
        %v249 = vpop.xlane.xlu0 %248
        %v251 = vperm.slane %v225, 0
        %v253 = vmul.f32 %v230, %v251
        %v254 = vmul.f32 %v253, 2.0
        %v255 = vmul.f32 %v254, %v237
        %v256 = vsub.f32 %v241, %v255
        %v257 = vmul.f32 %v256, %v251
        %v258 = vmul.f32 %v253, %v253
        %v259 = vadd.f32 %v257, %v258
        %v260 = vld [vmem:[%s2] sm:$0xff]
        %v261 = vld [vmem:[%s2 + $0x8] sm:$0xff]
        %v262 = vld [vmem:[%s2 + $0x10] sm:$0xff]
        %v263 = vld [vmem:[%s2 + $0x18] sm:$0xff]
        %v264 = vld [vmem:[%s3] sm:$0x1]
        %266 = vset.pattern.permute.xlu0 0
        %267 = vperm.xlu0 %266, %v253
        %v268 = vpop.permute.xlu0 %267
        %v269 = vlaneseq
        %v270 = vand.u32 %v269, 127
        %v271 = vperm.slane %v268, %v270
        %vm272 = vcmask 64512
        %v273 = vsel %vm272, %v271, 0
        %275 = vmatpush.msra.mxu0 0.0
        %276 = vmatpush.msra.mxu0 0.0
        %277 = vmatpush.msra.mxu0 0.0
        %278 = vmatpush.msra.mxu0 0.0
        %279 = vmatpush.msra.mxu0 0.0
        %280 = vmatpush.msra.mxu0 0.0
        %281 = vmatpush.msra.mxu0 0.0
        %282 = vmatpush.msra.mxu0 0.0
        %283 = vmatpush.msra.mxu0 0.0
        %284 = vmatpush.msra.mxu0 0.0
        %285 = vmatpush.msra.mxu0 0.0
        %286 = vmatpush.msra.mxu0 0.0
        %287 = vmatpush.msra.mxu0 0.0
        %288 = vmatpush.msra.mxu0 0.0
        %289 = vmatpush.msra.mxu0 0.0
        %290 = vmatpush.msra.mxu0 %v260
        %291 = vmatmul.f32.gmra.mxu0 %v273
        %v292 = vpop.f32.mrf.mxu0
        %v293 = vadd.f32 0.0, %v292
        %294 = vdwg.mxu0
        %v295 = vadd.f32 %v264, %v293
        %v297 = vperm.slane %v245, %v270
        %v298 = vsel %vm272, %v297, 0
        %300 = vmatpush.msra.mxu0 0.0
        %301 = vmatpush.msra.mxu0 0.0
        %302 = vmatpush.msra.mxu0 0.0
        %303 = vmatpush.msra.mxu0 0.0
        %304 = vmatpush.msra.mxu0 0.0
        %305 = vmatpush.msra.mxu0 0.0
        %306 = vmatpush.msra.mxu0 0.0
        %307 = vmatpush.msra.mxu0 0.0
        %308 = vmatpush.msra.mxu0 0.0
        %309 = vmatpush.msra.mxu0 0.0
        %310 = vmatpush.msra.mxu0 0.0
        %311 = vmatpush.msra.mxu0 0.0
        %312 = vmatpush.msra.mxu0 0.0
        %313 = vmatpush.msra.mxu0 0.0
        %314 = vmatpush.msra.mxu0 0.0
        %315 = vmatpush.msra.mxu0 %v261
        %316 = vmatmul.f32.gmra.mxu0 %v298
        %v317 = vpop.f32.mrf.mxu0
        %v318 = vadd.f32 0.0, %v317
        %319 = vdwg.mxu0
        %v320 = vadd.f32 %v295, %v318
        %v322 = vperm.slane %v249, %v270
        %v323 = vsel %vm272, %v322, 0
        %325 = vmatpush.msra.mxu0 0.0
        %326 = vmatpush.msra.mxu0 0.0
        %327 = vmatpush.msra.mxu0 0.0
        %328 = vmatpush.msra.mxu0 0.0
        %329 = vmatpush.msra.mxu0 0.0
        %330 = vmatpush.msra.mxu0 0.0
        %331 = vmatpush.msra.mxu0 0.0
        %332 = vmatpush.msra.mxu0 0.0
        %333 = vmatpush.msra.mxu0 0.0
        %334 = vmatpush.msra.mxu0 0.0
        %335 = vmatpush.msra.mxu0 0.0
        %336 = vmatpush.msra.mxu0 0.0
        %337 = vmatpush.msra.mxu0 0.0
        %338 = vmatpush.msra.mxu0 0.0
        %339 = vmatpush.msra.mxu0 0.0
        %340 = vmatpush.msra.mxu0 %v262
        %341 = vmatmul.f32.gmra.mxu0 %v323
        %v342 = vpop.f32.mrf.mxu0
        %v343 = vadd.f32 0.0, %v342
        %344 = vdwg.mxu0
        %v345 = vadd.f32 %v320, %v343
        %347 = vset.pattern.permute.xlu0 0
        %348 = vperm.xlu0 %347, %v259
        %v349 = vpop.permute.xlu0 %348
        %v350 = vperm.slane %v349, %v270
        %v351 = vsel %vm272, %v350, 0
        %353 = vmatpush.msra.mxu0 0.0
        %354 = vmatpush.msra.mxu0 0.0
        %355 = vmatpush.msra.mxu0 0.0
        %356 = vmatpush.msra.mxu0 0.0
        %357 = vmatpush.msra.mxu0 0.0
        %358 = vmatpush.msra.mxu0 0.0
        %359 = vmatpush.msra.mxu0 0.0
        %360 = vmatpush.msra.mxu0 0.0
        %361 = vmatpush.msra.mxu0 0.0
        %362 = vmatpush.msra.mxu0 0.0
        %363 = vmatpush.msra.mxu0 0.0
        %364 = vmatpush.msra.mxu0 0.0
        %365 = vmatpush.msra.mxu0 0.0
        %366 = vmatpush.msra.mxu0 0.0
        %367 = vmatpush.msra.mxu0 0.0
        %368 = vmatpush.msra.mxu0 %v263
        %369 = vmatmul.f32.gmra.mxu0 %v351
        %v370 = vpop.f32.mrf.mxu0
        %v371 = vadd.f32 0.0, %v370
        %372 = vdwg.mxu0
        %v373 = vadd.f32 %v345, %v371
        %vm374 = vcmask 122880
        %375 = vst.msk [vmem:[%s198] sm:$0x1] %vm374, %v373
        %s376 = sand.u32 %s120, 1
        %s377 = scalar_lea.sflag [#allocation3], %s376
        %s378 = sand.u32 %s120, 1
        %s379 = scalar_lea.vmem [#allocation2], %s378
        // Predicated region
        $region37: #{tpu_custom_call.1} parent=35 // pred_check
          %p380 = pneg %p130
        $region38: #{tpu_custom_call.1} parent=35 // pred_check_branch
          %382 = sbr.rel (%p380) target = $region40
        $region39: #{tpu_custom_call.1} parent=35 // pred_region
          %384 = vsyncadd %s377, 0
          %s385 = scalar_lea.hbm %s4, %s18
          %s387 = sshll.u32 %s379, 4
          %s388 = int_to_ptr.vmem [resolvable:$true] %s387
          %s389 = sshll.u32 %s385, 4
          %s390 = int_to_ptr.hbm [resolvable:$true] %s389
          %392 = dma.vmem_to_hbm [thread:$0]  %s388, 16, %s390, %s377
        $region40: #{tpu_custom_call.1} parent=35 // pred_fallthru
          _
      $region36: #{tpu_custom_call.1} parent=5 // pred_fallthru
        _
      %p393 = scmp.le.s32.totalorder 2, %s13
      // Predicated region
      $region41: #{tpu_custom_call.1} parent=5 // pred_check
        %p394 = pneg %p393
      $region42: #{tpu_custom_call.1} parent=5 // pred_check_branch
        %396 = sbr.rel (%p394) target = $region44
      $region43: #{tpu_custom_call.1} parent=5 // pred_region
        %s397 = ssub.s32 %s13, 2
        // Predicated region
        $region45: #{tpu_custom_call.1} parent=43 // pred_check
          %p398 = pneg %p136
        $region46: #{tpu_custom_call.1} parent=43 // pred_check_branch
          %400 = sbr.rel (%p398) target = $region48
        $region47: #{tpu_custom_call.1} parent=43 // pred_region
          %s401 = sand.u32 %s121, 1
          %s402 = scalar_lea.sflag [#allocation3], %s401
          %s403 = sand.u32 %s121, 1
          %s404 = scalar_lea.vmem [#allocation2], %s403
          %406 = dma.done %s402, 16
        $region48: #{tpu_custom_call.1} parent=43 // pred_fallthru
          _
      $region44: #{tpu_custom_call.1} parent=5 // pred_fallthru
        _
    $region6: #{tpu_custom_call.1} parent=1 // loop_footer
      %s17 = sadd.s32 1, %s13
    $region7: #{tpu_custom_call.1} parent=1 // loop_footer_branch
      %12 = sbr.rel target = $region3
    $region8: #{tpu_custom_call.1} parent=1 // loop_exit
      _
    %407 = vsyncpa [#allocation3], 1
    %s408 = scalar_lea.sflag [#allocation3], 1
    %409 = vsyncpa %s408, 1

</llo_original>
